<compile_context>
chip_gen: v7x
topology: tpu7x:2x2x1
jax: 0.10.0
libtpu: 0.0.40
codegen_flags: <defaults>
</compile_context>

<pallas_src>
import jax
import jax.numpy as jnp
from jax.experimental import pallas as pl
from jax.experimental.pallas import tpu as pltpu

SUBLANE = 8  # f32 sublane count


def _round_up(n, m):
    return ((n + m - 1) // m) * m


def mlp_kernel(x_ref, w1_ref, b1_ref, w2_ref, b2_ref,
               w3_ref, b3_ref, w4_ref, b4_ref, o_ref):
    # Fused 4-layer MLP: matmuls on the MXU (f32 accumulation),
    # bias + ReLU on the VPU in f32, everything resident in VMEM.
    wdt = w1_ref.dtype  # compute dtype of the matmul operands (f32 or bf16)
    h = jnp.dot(x_ref[...].astype(wdt), w1_ref[...],
                preferred_element_type=jnp.float32)
    h = jnp.maximum(h + b1_ref[...], 0.0)
    h = jnp.dot(h.astype(wdt), w2_ref[...],
                preferred_element_type=jnp.float32)
    h = jnp.maximum(h + b2_ref[...], 0.0)
    h = jnp.dot(h.astype(wdt), w3_ref[...],
                preferred_element_type=jnp.float32)
    h = jnp.maximum(h + b3_ref[...], 0.0)
    out = jnp.dot(h.astype(wdt), w4_ref[...],
                  preferred_element_type=jnp.float32) + b4_ref[...]
    o_ref[...] = out.astype(o_ref.dtype)


def _choose_batch_tile(B, batch_tile):
    """Pick a batch tile: single step for tiny B, otherwise >= 2 parallel
    tiles (keeps both v7x TensorCores busy) capped at `batch_tile`."""
    if B < 64:
        return B  # full-extent block is legal even when B % 8 != 0
    batch_tile = _round_up(batch_tile, SUBLANE)
    return min(batch_tile, _round_up(-(-B // 2), SUBLANE))


def mlp_forward(x, params, *, batch_tile=1024):
    """x: (B, num_i) float32.  params: dict of (in,out) weights, (1,out) biases
    (weights may be pre-cast to bf16 via prepare_params for the fast path).

    Returns (B, 4) float32, identical semantics to the PyTorch module.
    """
    B, num_i = x.shape
    w1, b1 = params["w1"], params["b1"]
    w2, b2 = params["w2"], params["b2"]
    w3, b3 = params["w3"], params["b3"]
    w4, b4 = params["w4"], params["b4"]
    num_h = w1.shape[1]
    num_o = w3.shape[1]
    num_out = w4.shape[1]  # = 4

    tile = _choose_batch_tile(B, batch_tile)
    grid = (pl.cdiv(B, tile),)

    # Weights/biases: constant index_map -> stay resident in VMEM.
    full = lambda arr: pl.BlockSpec(arr.shape, lambda i: (0, 0))

    # Advisory cost: exact streamed bytes (x read, (B,4) write, tiny weights).
    flops = 2 * B * (num_i * num_h + num_h * num_h + num_h * num_o
                     + num_o * num_out)
    wbytes = sum(int(w.size) * w.dtype.itemsize for w in (w1, w2, w3, w4))
    bbytes = sum(int(b.size) * b.dtype.itemsize for b in (b1, b2, b3, b4))
    bytes_accessed = (int(x.size) * x.dtype.itemsize
                      + B * num_out * 4 + wbytes + bbytes)

    out = pl.pallas_call(
        mlp_kernel,
        out_shape=jax.ShapeDtypeStruct((B, num_out), jnp.float32),
        grid_spec=pltpu.PrefetchScalarGridSpec(
            num_scalar_prefetch=0,
            grid=grid,
            in_specs=[
                pl.BlockSpec((tile, num_i), lambda i: (i, 0)),  # streaming x
                full(w1), full(b1),                              # resident
                full(w2), full(b2),
                full(w3), full(b3),
                full(w4), full(b4),
            ],
            out_specs=pl.BlockSpec((tile, num_out), lambda i: (i, 0)),
        ),
        compiler_params=pltpu.CompilerParams(
            dimension_semantics=("parallel",)),
        cost_estimate=pl.CostEstimate(
            flops=flops, transcendentals=0, bytes_accessed=bytes_accessed),
    )(x, w1, b1, w2, b2, w3, b3, w4, b4)

    return out  # already exactly (B, 4); ragged tail rows were never written


def prepare_params(params, dtype=jnp.bfloat16):
    """One-time weight cast for the fast (bf16 read) path; biases stay f32
    because the bias+ReLU epilogue runs on the f32 VPU on all generations."""
    out = dict(params)
    for k in ("w1", "w2", "w3", "w4"):
        out[k] = params[k].astype(dtype)
    return out


def init_params(key, num_i, num_h, num_o):
    """Deterministic init mimicking PyTorch's U(-1/sqrt(fan_in), 1/sqrt(fan_in))."""
    def linear(k, fan_in, fan_out):
        kw, kb = jax.random.split(k)
        bound = 1.0 / jnp.sqrt(fan_in)
        w = jax.random.uniform(kw, (fan_in, fan_out), jnp.float32, -bound, bound)
        b = jax.random.uniform(kb, (1, fan_out), jnp.float32, -bound, bound)
        return w, b

    k1, k2, k3, k4 = jax.random.split(key, 4)
    w1, b1 = linear(k1, num_i, num_h)
    w2, b2 = linear(k2, num_h, num_h)
    w3, b3 = linear(k3, num_h, num_o)
    w4, b4 = linear(k4, num_o, 4)
    return dict(w1=w1, b1=b1, w2=w2, b2=b2, w3=w3, b3=b3, w4=w4, b4=b4)


def mlp_reference(x, p):
    relu = lambda v: jnp.maximum(v, 0.0)
    h = relu(x @ p["w1"] + p["b1"])
    h = relu(h @ p["w2"] + p["b2"])
    h = relu(h @ p["w3"] + p["b3"])
    return h @ p["w4"] + p["b4"]


if __name__ == "__main__":
    num_i, num_h, num_o = 32, 64, 16
    batch = 16

    key = jax.random.PRNGKey(0)
    kx, kp = jax.random.split(key)
    x = jax.random.normal(kx, (batch, num_i), jnp.float32)
    params = init_params(kp, num_i, num_h, num_o)
    ref = mlp_reference(x, params)

    # f32 path: bit-tight vs. the PyTorch-equivalent reference (single step).
    out_f32 = jax.block_until_ready(mlp_forward(x, params))
    assert out_f32.shape == (batch, 4), out_f32.shape
    assert jnp.allclose(out_f32, ref, atol=1e-4, rtol=1e-4), "mismatch (f32)"

    # Fast path: weights pre-cast once to bf16 (f32 accumulation, f32
    # bias+ReLU).  Looser tolerance: intentional bf16 accuracy/perf trade.
    params_bf16 = prepare_params(params)
    out_bf16 = jax.block_until_ready(mlp_forward(x, params_bf16))
    assert jnp.allclose(out_bf16, ref, atol=5e-2, rtol=5e-2), "mismatch (bf16)"

    # Larger, non-divisible batch: >= 2 parallel tiles (both v7x cores busy),
    # ragged last tile handled by Pallas boundary masking (no batch padding).
    x_big = jax.random.normal(jax.random.fold_in(kx, 1), (300, num_i),
                              jnp.float32)
    ref_big = mlp_reference(x_big, params)
    out_big = jax.block_until_ready(mlp_forward(x_big, params))
    assert out_big.shape == (300, 4), out_big.shape
    assert jnp.allclose(out_big, ref_big, atol=1e-4, rtol=1e-4), "mismatch (tiled f32)"

    out_big_bf16 = jax.block_until_ready(mlp_forward(x_big, params_bf16))
    assert jnp.allclose(out_big_bf16, ref_big, atol=5e-2, rtol=5e-2), "mismatch (tiled bf16)"

    print("KERNEL_OK")
</pallas_src>

<mosaic_0001>
module attributes {stable_mosaic.version = 11 : i64} {
  func.func @mlp_kernel(%arg0: i32, %arg1: memref<16x32xf32, #tpu.memory_space<vmem>>, %arg2: memref<32x64xf32, #tpu.memory_space<vmem>>, %arg3: memref<1x64xf32, #tpu.memory_space<vmem>>, %arg4: memref<64x64xf32, #tpu.memory_space<vmem>>, %arg5: memref<1x64xf32, #tpu.memory_space<vmem>>, %arg6: memref<64x16xf32, #tpu.memory_space<vmem>>, %arg7: memref<1x16xf32, #tpu.memory_space<vmem>>, %arg8: memref<16x4xf32, #tpu.memory_space<vmem>>, %arg9: memref<1x4xf32, #tpu.memory_space<vmem>>, %arg10: memref<16x4xf32, #tpu.memory_space<vmem>>) attributes {dimension_semantics = [#tpu.dimension_semantics<parallel>], iteration_bounds = array<i64: 1>, scalar_prefetch = 0 : i64, scratch_operands = 0 : i64, tpu.core_type = #tpu.core_type<tc>, window_params = [{transform_indices = @transform_0, window_bounds = array<i64: 16, 32>}, {pipeline_mode = #tpu.pipeline_mode<synchronous>, transform_indices = @transform_1, window_bounds = array<i64: 32, 64>}, {pipeline_mode = #tpu.pipeline_mode<synchronous>, transform_indices = @transform_2, window_bounds = array<i64: 1, 64>}, {pipeline_mode = #tpu.pipeline_mode<synchronous>, transform_indices = @transform_3, window_bounds = array<i64: 64, 64>}, {pipeline_mode = #tpu.pipeline_mode<synchronous>, transform_indices = @transform_4, window_bounds = array<i64: 1, 64>}, {pipeline_mode = #tpu.pipeline_mode<synchronous>, transform_indices = @transform_5, window_bounds = array<i64: 64, 16>}, {pipeline_mode = #tpu.pipeline_mode<synchronous>, transform_indices = @transform_6, window_bounds = array<i64: 1, 16>}, {pipeline_mode = #tpu.pipeline_mode<synchronous>, transform_indices = @transform_7, window_bounds = array<i64: 16, 4>}, {pipeline_mode = #tpu.pipeline_mode<synchronous>, transform_indices = @transform_8, window_bounds = array<i64: 1, 4>}, {transform_indices = @transform_9, window_bounds = array<i64: 16, 4>}]} {
    %c0 = arith.constant 0 : index
    %c0_0 = arith.constant 0 : index
    %0 = vector.load %arg1[%c0, %c0_0] : memref<16x32xf32, #tpu.memory_space<vmem>>, vector<16x32xf32>
    %c0_1 = arith.constant 0 : index
    %c0_2 = arith.constant 0 : index
    %1 = vector.load %arg2[%c0_1, %c0_2] : memref<32x64xf32, #tpu.memory_space<vmem>>, vector<32x64xf32>
    %cst = arith.constant dense<0.000000e+00> : vector<16x64xf32>
    %2 = tpu.matmul %0, %1, %cst {dimension_numbers = #tpu.dot_dimension_numbers<[1], [0], [0], [1], [0, 0, 1, 1], [], []>} : vector<16x32xf32>, vector<32x64xf32>, vector<16x64xf32> -> vector<16x64xf32>
    %c0_3 = arith.constant 0 : index
    %c0_4 = arith.constant 0 : index
    %3 = vector.load %arg3[%c0_3, %c0_4] : memref<1x64xf32, #tpu.memory_space<vmem>>, vector<1x64xf32>
    %4 = vector.broadcast %3 : vector<1x64xf32> to vector<16x64xf32>
    %5 = arith.addf %2, %4 : vector<16x64xf32>
    %cst_5 = arith.constant 0.000000e+00 : f32
    %6 = vector.broadcast %cst_5 : f32 to vector<16x64xf32>
    %7 = arith.maximumf %5, %6 : vector<16x64xf32>
    %c0_6 = arith.constant 0 : index
    %c0_7 = arith.constant 0 : index
    %8 = vector.load %arg4[%c0_6, %c0_7] : memref<64x64xf32, #tpu.memory_space<vmem>>, vector<64x64xf32>
    %cst_8 = arith.constant dense<0.000000e+00> : vector<16x64xf32>
    %9 = tpu.matmul %7, %8, %cst_8 {dimension_numbers = #tpu.dot_dimension_numbers<[1], [0], [0], [1], [0, 0, 1, 1], [], []>} : vector<16x64xf32>, vector<64x64xf32>, vector<16x64xf32> -> vector<16x64xf32>
    %c0_9 = arith.constant 0 : index
    %c0_10 = arith.constant 0 : index
    %10 = vector.load %arg5[%c0_9, %c0_10] : memref<1x64xf32, #tpu.memory_space<vmem>>, vector<1x64xf32>
    %11 = vector.broadcast %10 : vector<1x64xf32> to vector<16x64xf32>
    %12 = arith.addf %9, %11 : vector<16x64xf32>
    %cst_11 = arith.constant 0.000000e+00 : f32
    %13 = vector.broadcast %cst_11 : f32 to vector<16x64xf32>
    %14 = arith.maximumf %12, %13 : vector<16x64xf32>
    %c0_12 = arith.constant 0 : index
    %c0_13 = arith.constant 0 : index
    %15 = vector.load %arg6[%c0_12, %c0_13] : memref<64x16xf32, #tpu.memory_space<vmem>>, vector<64x16xf32>
    %cst_14 = arith.constant dense<0.000000e+00> : vector<16x16xf32>
    %16 = tpu.matmul %14, %15, %cst_14 {dimension_numbers = #tpu.dot_dimension_numbers<[1], [0], [0], [1], [0, 0, 1, 1], [], []>} : vector<16x64xf32>, vector<64x16xf32>, vector<16x16xf32> -> vector<16x16xf32>
    %c0_15 = arith.constant 0 : index
    %c0_16 = arith.constant 0 : index
    %17 = vector.load %arg7[%c0_15, %c0_16] : memref<1x16xf32, #tpu.memory_space<vmem>>, vector<1x16xf32>
    %18 = vector.broadcast %17 : vector<1x16xf32> to vector<16x16xf32>
    %19 = arith.addf %16, %18 : vector<16x16xf32>
    %cst_17 = arith.constant 0.000000e+00 : f32
    %20 = vector.broadcast %cst_17 : f32 to vector<16x16xf32>
    %21 = arith.maximumf %19, %20 : vector<16x16xf32>
    %c0_18 = arith.constant 0 : index
    %c0_19 = arith.constant 0 : index
    %22 = vector.load %arg8[%c0_18, %c0_19] : memref<16x4xf32, #tpu.memory_space<vmem>>, vector<16x4xf32>
    %cst_20 = arith.constant dense<0.000000e+00> : vector<16x4xf32>
    %23 = tpu.matmul %21, %22, %cst_20 {dimension_numbers = #tpu.dot_dimension_numbers<[1], [0], [0], [1], [0, 0, 1, 1], [], []>} : vector<16x16xf32>, vector<16x4xf32>, vector<16x4xf32> -> vector<16x4xf32>
    %c0_21 = arith.constant 0 : index
    %c0_22 = arith.constant 0 : index
    %24 = vector.load %arg9[%c0_21, %c0_22] : memref<1x4xf32, #tpu.memory_space<vmem>>, vector<1x4xf32>
    %25 = vector.broadcast %24 : vector<1x4xf32> to vector<16x4xf32>
    %26 = arith.addf %23, %25 : vector<16x4xf32>
    %c0_23 = arith.constant 0 : index
    %c0_24 = arith.constant 0 : index
    %27 = vector.load %arg10[%c0_23, %c0_24] : memref<16x4xf32, #tpu.memory_space<vmem>>, vector<16x4xf32>
    tpu.vector_store %arg10[%c0_23, %c0_24], %26 {strides = array<i32>} : memref<16x4xf32, #tpu.memory_space<vmem>>, vector<16x4xf32>,
    return
  }
  func.func @transform_0(%arg0: i32) -> (i32, i32) {
    %c0_i32 = arith.constant 0 : i32
    %c0_i32_0 = arith.constant 0 : i32
    return %arg0, %c0_i32 : i32, i32
  }
  func.func @transform_1(%arg0: i32) -> (i32, i32) {
    %c0_i32 = arith.constant 0 : i32
    %c0_i32_0 = arith.constant 0 : i32
    %c0_i32_1 = arith.constant 0 : i32
    return %c0_i32, %c0_i32_0 : i32, i32
  }
  func.func @transform_2(%arg0: i32) -> (i32, i32) {
    %c0_i32 = arith.constant 0 : i32
    %c0_i32_0 = arith.constant 0 : i32
    %c0_i32_1 = arith.constant 0 : i32
    return %c0_i32, %c0_i32_0 : i32, i32
  }
  func.func @transform_3(%arg0: i32) -> (i32, i32) {
    %c0_i32 = arith.constant 0 : i32
    %c0_i32_0 = arith.constant 0 : i32
    %c0_i32_1 = arith.constant 0 : i32
    return %c0_i32, %c0_i32_0 : i32, i32
  }
  func.func @transform_4(%arg0: i32) -> (i32, i32) {
    %c0_i32 = arith.constant 0 : i32
    %c0_i32_0 = arith.constant 0 : i32
    %c0_i32_1 = arith.constant 0 : i32
    return %c0_i32, %c0_i32_0 : i32, i32
  }
  func.func @transform_5(%arg0: i32) -> (i32, i32) {
    %c0_i32 = arith.constant 0 : i32
    %c0_i32_0 = arith.constant 0 : i32
    %c0_i32_1 = arith.constant 0 : i32
    return %c0_i32, %c0_i32_0 : i32, i32
  }
  func.func @transform_6(%arg0: i32) -> (i32, i32) {
    %c0_i32 = arith.constant 0 : i32
    %c0_i32_0 = arith.constant 0 : i32
    %c0_i32_1 = arith.constant 0 : i32
    return %c0_i32, %c0_i32_0 : i32, i32
  }
  func.func @transform_7(%arg0: i32) -> (i32, i32) {
    %c0_i32 = arith.constant 0 : i32
    %c0_i32_0 = arith.constant 0 : i32
    %c0_i32_1 = arith.constant 0 : i32
    return %c0_i32, %c0_i32_0 : i32, i32
  }
  func.func @transform_8(%arg0: i32) -> (i32, i32) {
    %c0_i32 = arith.constant 0 : i32
    %c0_i32_0 = arith.constant 0 : i32
    %c0_i32_1 = arith.constant 0 : i32
    return %c0_i32, %c0_i32_0 : i32, i32
  }
  func.func @transform_9(%arg0: i32) -> (i32, i32) {
    %c0_i32 = arith.constant 0 : i32
    %c0_i32_0 = arith.constant 0 : i32
    return %arg0, %c0_i32 : i32, i32
  }
}

</mosaic_0001>

<llo_original>
// kernel: tpu_custom_call.1
$region0: #{tpu_custom_call.1}
  #allocation0 [shape = 'u32[]', space=smem, size = 0x4, offset = 0x4, fixed_abs, tag = 'smem constant byte address 0x4 - core index']
  #allocation1 [shape = 'u32[144,128]{1,0:T(1,128)}', space=vmem, size = 0x12000, scoped, tag = 'internal scratch']
  %s0 = inlined_call_operand.hbm [shape: f32[16,32], index: 0, kind: input, shape index: {}]
  %s1 = inlined_call_operand.vmem [shape: f32[32,64], index: 1, kind: input, shape index: {}]
  %s2 = inlined_call_operand.vmem [shape: f32[1,64], index: 2, kind: input, shape index: {}]
  %s3 = inlined_call_operand.vmem [shape: f32[64,64], index: 3, kind: input, shape index: {}]
  %s4 = inlined_call_operand.vmem [shape: f32[1,64], index: 4, kind: input, shape index: {}]
  %s5 = inlined_call_operand.vmem [shape: f32[64,16], index: 5, kind: input, shape index: {}]
  %s6 = inlined_call_operand.vmem [shape: f32[1,16], index: 6, kind: input, shape index: {}]
  %s7 = inlined_call_operand.vmem [shape: f32[16,4], index: 7, kind: input, shape index: {}]
  %s8 = inlined_call_operand.vmem [shape: f32[1,4], index: 8, kind: input, shape index: {}]
  %s9 = inlined_call_operand.vmem [shape: f32[16,4], index: 9, kind: output, shape index: {}]
  %s10 = sld [smem:[#allocation0]]
  $region50: #{tpu_custom_call.1} parent=0
    _
  %s12 = ssub.s32 1, %s10
  %s13 = scalar_select 0, %s12, %s10
  $region1: #{tpu_custom_call.1} parent=0
    #allocation2 [shape = 'u8[8192]{0}', space=vmem, size = 0x2000, scoped, tag = 'input window, operand 0, single buffered']
    #allocation3 [shape = 's32[1]{0}', space=sflag, size = 0x4, scoped, tag = 'scoped memory for tpu_custom_call.1']
    %14 = vsyncpa [#allocation3], 0
    // Predicated region
    $region2: #{tpu_custom_call.1} parent=1 // pred_check
      _
    $region3: #{tpu_custom_call.1} parent=1 // pred_check_branch
      %16 = sbr.rel (0) target = $region5
    $region4: #{tpu_custom_call.1} parent=1 // pred_region
      %s18 = ssub.s32 256, 256
      %19 = vsyncadd [#allocation3], %s18
      %s20 = sshll.u32 [#allocation2], 4
      %s21 = int_to_ptr.vmem [resolvable:$true] %s20
      %26 = dma.hbm_to_vmem [thread:$0]  %s0, 256, %s21, [#allocation3], 128, 128, 8
    $region5: #{tpu_custom_call.1} parent=1 // pred_fallthru
      _
    // Predicated region
    $region6: #{tpu_custom_call.1} parent=1 // pred_check
      _
    $region7: #{tpu_custom_call.1} parent=1 // pred_check_branch
      %28 = sbr.rel (0) target = $region9
    $region8: #{tpu_custom_call.1} parent=1 // pred_region
      _
    $region9: #{tpu_custom_call.1} parent=1 // pred_fallthru
      _
    // Predicated region
    $region10: #{tpu_custom_call.1} parent=1 // pred_check
      _
    $region11: #{tpu_custom_call.1} parent=1 // pred_check_branch
      %30 = sbr.rel (0) target = $region13
    $region12: #{tpu_custom_call.1} parent=1 // pred_region
      _
    $region13: #{tpu_custom_call.1} parent=1 // pred_fallthru
      _
    // Predicated region
    $region14: #{tpu_custom_call.1} parent=1 // pred_check
      _
    $region15: #{tpu_custom_call.1} parent=1 // pred_check_branch
      %32 = sbr.rel (0) target = $region17
    $region16: #{tpu_custom_call.1} parent=1 // pred_region
      _
    $region17: #{tpu_custom_call.1} parent=1 // pred_fallthru
      _
    // Predicated region
    $region18: #{tpu_custom_call.1} parent=1 // pred_check
      _
    $region19: #{tpu_custom_call.1} parent=1 // pred_check_branch
      %34 = sbr.rel (0) target = $region21
    $region20: #{tpu_custom_call.1} parent=1 // pred_region
      _
    $region21: #{tpu_custom_call.1} parent=1 // pred_fallthru
      _
    // Predicated region
    $region22: #{tpu_custom_call.1} parent=1 // pred_check
      _
    $region23: #{tpu_custom_call.1} parent=1 // pred_check_branch
      %36 = sbr.rel (0) target = $region25
    $region24: #{tpu_custom_call.1} parent=1 // pred_region
      _
    $region25: #{tpu_custom_call.1} parent=1 // pred_fallthru
      _
    // Predicated region
    $region26: #{tpu_custom_call.1} parent=1 // pred_check
      _
    $region27: #{tpu_custom_call.1} parent=1 // pred_check_branch
      %38 = sbr.rel (0) target = $region29
    $region28: #{tpu_custom_call.1} parent=1 // pred_region
      _
    $region29: #{tpu_custom_call.1} parent=1 // pred_fallthru
      _
    // Predicated region
    $region30: #{tpu_custom_call.1} parent=1 // pred_check
      _
    $region31: #{tpu_custom_call.1} parent=1 // pred_check_branch
      %40 = sbr.rel (0) target = $region33
    $region32: #{tpu_custom_call.1} parent=1 // pred_region
      _
    $region33: #{tpu_custom_call.1} parent=1 // pred_fallthru
      _
    // Predicated region
    $region34: #{tpu_custom_call.1} parent=1 // pred_check
      _
    $region35: #{tpu_custom_call.1} parent=1 // pred_check_branch
      %42 = sbr.rel (0) target = $region37
    $region36: #{tpu_custom_call.1} parent=1 // pred_region
      _
    $region37: #{tpu_custom_call.1} parent=1 // pred_fallthru
      _
    // Predicated region
    $region38: #{tpu_custom_call.1} parent=1 // pred_check
      _
    $region39: #{tpu_custom_call.1} parent=1 // pred_check_branch
      %44 = sbr.rel (0) target = $region41
    $region40: #{tpu_custom_call.1} parent=1 // pred_region
      %45 = dma.done [#allocation3], 256
    $region41: #{tpu_custom_call.1} parent=1 // pred_fallthru
      _
    %v46 = vld [vmem:[#allocation2] sm:$0xff]
    %v47 = vld [vmem:[#allocation2 + $0x8] sm:$0xff]
    %v48 = vld [vmem:[%s1] sm:$0xff]
    %v49 = vld [vmem:[%s1 + $0x8] sm:$0xff]
    %v50 = vld [vmem:[%s1 + $0x10] sm:$0xff]
    %v51 = vld [vmem:[%s1 + $0x18] sm:$0xff]
    %v52 = vld [vmem:[%s2] sm:$0x1]
    %v54 = vlaneseq
    %v55 = vshrl.u32 %v54, 7
    %v56 = vsub.s32 0, %v55
    %v57 = vrot.slane %v52, %v56
    %vm59 = vcmask 261120
    %v61 = vsel %vm59, %v46, 0
    %v64 = vsel %vm59, %v47, 0
    %66 = vmatprep.subr.mxu0 0.0
    %67 = vmatpush1.msra.mxu0 %v48
    %68 = vmatprep.subr.mxu0 0.0
    %69 = vmatpush1.msra.mxu0 %v49
    %70 = vmatprep.subr.mxu0 0.0
    %71 = vmatpush1.msra.mxu0 %v50
    %72 = vmatprep.subr.mxu0 0.0
    %73 = vmatpush1.msra.mxu0 %v51
    %74 = vmatprep.subr.mxu0 0.0
    %75 = vmatpush1.msra.mxu0 0.0
    %76 = vmatprep.subr.mxu0 0.0
    %77 = vmatpush1.msra.mxu0 0.0
    %78 = vmatprep.subr.mxu0 0.0
    %79 = vmatpush1.msra.mxu0 0.0
    %80 = vmatprep.subr.mxu0 0.0
    %81 = vmatpush1.msra.mxu0 0.0
    %82 = vmatprep.subr.mxu0 0.0
    %83 = vmatpush1.msra.mxu0 0.0
    %84 = vmatprep.subr.mxu0 0.0
    %85 = vmatpush1.msra.mxu0 0.0
    %86 = vmatprep.subr.mxu0 0.0
    %87 = vmatpush1.msra.mxu0 0.0
    %88 = vmatprep.subr.mxu0 0.0
    %89 = vmatpush1.msra.mxu0 0.0
    %90 = vmatprep.subr.mxu0 0.0
    %91 = vmatpush1.msra.mxu0 0.0
    %92 = vmatprep.subr.mxu0 0.0
    %93 = vmatpush1.msra.mxu0 0.0
    %94 = vmatprep.subr.mxu0 0.0
    %95 = vmatpush1.msra.mxu0 0.0
    %96 = vmatprep.subr.mxu0 0.0
    %97 = vmatpush1.msra.mxu0 0.0
    %98 = vmatprep.subr.mxu0 0.0
    %99 = vmatpush1.msra.mxu0 0.0
    %100 = vmatprep.subr.mxu0 0.0
    %101 = vmatpush1.msra.mxu0 0.0
    %102 = vmatprep.subr.mxu0 0.0
    %103 = vmatpush1.msra.mxu0 0.0
    %104 = vmatprep.subr.mxu0 0.0
    %105 = vmatpush1.msra.mxu0 0.0
    %106 = vmatprep.subr.mxu0 0.0
    %107 = vmatpush1.msra.mxu0 0.0
    %108 = vmatprep.subr.mxu0 0.0
    %109 = vmatpush1.msra.mxu0 0.0
    %110 = vmatprep.subr.mxu0 0.0
    %111 = vmatpush1.msra.mxu0 0.0
    %112 = vmatprep.subr.mxu0 0.0
    %113 = vmatpush1.msra.mxu0 0.0
    %114 = vmatprep.subr.mxu0 0.0
    %115 = vmatpush1.msra.mxu0 0.0
    %116 = vmatprep.subr.mxu0 0.0
    %117 = vmatpush1.msra.mxu0 0.0
    %118 = vmatprep.subr.mxu0 0.0
    %119 = vmatpush1.msra.mxu0 0.0
    %120 = vmatprep.subr.mxu0 0.0
    %121 = vmatpush1.msra.mxu0 0.0
    %122 = vmatprep.subr.mxu0 0.0
    %123 = vmatpush1.msra.mxu0 0.0
    %124 = vmatprep.subr.mxu0 0.0
    %125 = vmatpush1.msra.mxu0 0.0
    %126 = vmatprep.subr.mxu0 0.0
    %127 = vmatpush1.msra.mxu0 0.0
    %128 = vmatprep.subr.mxu0 0.0
    %129 = vmatpush1.msra.mxu0 0.0
    %130 = vmatprep.mubr.f32.mxu0 0.0
    %131 = vmatmul.mubr.f32.gmra.mrb[0].mxu0 %v61
    %v132 = vpop.f32.mrb[0].mxu0
    %v133 = vadd.f32 %v57, %v132
    %v134 = vpop.f32.mrb[0].mxu0
    %135 = vmatprep.mubr.f32.mxu0 0.0
    %136 = vmatmul.mubr.f32.gmra.mrb[0].mxu0 %v64
    %v137 = vpop.f32.mrb[0].mxu0
    %v138 = vadd.f32 %v57, %v137
    %v139 = vpop.f32.mrb[0].mxu0
    %140 = vdwg.mxu0
    %v141 = vmax.f32 %v133, 0.0
    %v142 = vmax.f32 %v138, 0.0
    %v143 = vld [vmem:[%s3] sm:$0xff]
    %v144 = vld [vmem:[%s3 + $0x8] sm:$0xff]
    %v145 = vld [vmem:[%s3 + $0x10] sm:$0xff]
    %v146 = vld [vmem:[%s3 + $0x18] sm:$0xff]
    %v147 = vld [vmem:[%s3 + $0x20] sm:$0xff]
    %v148 = vld [vmem:[%s3 + $0x28] sm:$0xff]
    %v149 = vld [vmem:[%s3 + $0x30] sm:$0xff]
    %v150 = vld [vmem:[%s3 + $0x38] sm:$0xff]
    %v151 = vld [vmem:[%s4] sm:$0x1]
    %v153 = vlaneseq
    %v154 = vshrl.u32 %v153, 7
    %v155 = vsub.s32 0, %v154
    %v156 = vrot.slane %v151, %v155
    %vm158 = vcmask 523264
    %v160 = vsel %vm158, %v141, 0
    %v163 = vsel %vm158, %v142, 0
    %165 = vmatprep.subr.mxu0 0.0
    %166 = vmatpush1.msra.mxu0 %v143
    %167 = vmatprep.subr.mxu0 0.0
    %168 = vmatpush1.msra.mxu0 %v144
    %169 = vmatprep.subr.mxu0 0.0
    %170 = vmatpush1.msra.mxu0 %v145
    %171 = vmatprep.subr.mxu0 0.0
    %172 = vmatpush1.msra.mxu0 %v146
    %173 = vmatprep.subr.mxu0 0.0
    %174 = vmatpush1.msra.mxu0 %v147
    %175 = vmatprep.subr.mxu0 0.0
    %176 = vmatpush1.msra.mxu0 %v148
    %177 = vmatprep.subr.mxu0 0.0
    %178 = vmatpush1.msra.mxu0 %v149
    %179 = vmatprep.subr.mxu0 0.0
    %180 = vmatpush1.msra.mxu0 %v150
    %181 = vmatprep.subr.mxu0 0.0
    %182 = vmatpush1.msra.mxu0 0.0
    %183 = vmatprep.subr.mxu0 0.0
    %184 = vmatpush1.msra.mxu0 0.0
    %185 = vmatprep.subr.mxu0 0.0
    %186 = vmatpush1.msra.mxu0 0.0
    %187 = vmatprep.subr.mxu0 0.0
    %188 = vmatpush1.msra.mxu0 0.0
    %189 = vmatprep.subr.mxu0 0.0
    %190 = vmatpush1.msra.mxu0 0.0
    %191 = vmatprep.subr.mxu0 0.0
    %192 = vmatpush1.msra.mxu0 0.0
    %193 = vmatprep.subr.mxu0 0.0
    %194 = vmatpush1.msra.mxu0 0.0
    %195 = vmatprep.subr.mxu0 0.0
    %196 = vmatpush1.msra.mxu0 0.0
    %197 = vmatprep.subr.mxu0 0.0
    %198 = vmatpush1.msra.mxu0 0.0
    %199 = vmatprep.subr.mxu0 0.0
    %200 = vmatpush1.msra.mxu0 0.0
    %201 = vmatprep.subr.mxu0 0.0
    %202 = vmatpush1.msra.mxu0 0.0
    %203 = vmatprep.subr.mxu0 0.0
    %204 = vmatpush1.msra.mxu0 0.0
    %205 = vmatprep.subr.mxu0 0.0
    %206 = vmatpush1.msra.mxu0 0.0
    %207 = vmatprep.subr.mxu0 0.0
    %208 = vmatpush1.msra.mxu0 0.0
    %209 = vmatprep.subr.mxu0 0.0
    %210 = vmatpush1.msra.mxu0 0.0
    %211 = vmatprep.subr.mxu0 0.0
    %212 = vmatpush1.msra.mxu0 0.0
    %213 = vmatprep.subr.mxu0 0.0
    %214 = vmatpush1.msra.mxu0 0.0
    %215 = vmatprep.subr.mxu0 0.0
    %216 = vmatpush1.msra.mxu0 0.0
    %217 = vmatprep.subr.mxu0 0.0
    %218 = vmatpush1.msra.mxu0 0.0
    %219 = vmatprep.subr.mxu0 0.0
    %220 = vmatpush1.msra.mxu0 0.0
    %221 = vmatprep.subr.mxu0 0.0
    %222 = vmatpush1.msra.mxu0 0.0
    %223 = vmatprep.subr.mxu0 0.0
    %224 = vmatpush1.msra.mxu0 0.0
    %225 = vmatprep.subr.mxu0 0.0
    %226 = vmatpush1.msra.mxu0 0.0
    %227 = vmatprep.subr.mxu0 0.0
    %228 = vmatpush1.msra.mxu0 0.0
    %229 = vmatprep.mubr.f32.mxu0 0.0
    %230 = vmatmul.mubr.f32.gmra.mrb[0].mxu0 %v160
    %v231 = vpop.f32.mrb[0].mxu0
    %v232 = vadd.f32 %v156, %v231
    %v233 = vpop.f32.mrb[0].mxu0
    %234 = vmatprep.mubr.f32.mxu0 0.0
    %235 = vmatmul.mubr.f32.gmra.mrb[0].mxu0 %v163
    %v236 = vpop.f32.mrb[0].mxu0
    %v237 = vadd.f32 %v156, %v236
    %v238 = vpop.f32.mrb[0].mxu0
    %239 = vdwg.mxu0
    %v240 = vmax.f32 %v232, 0.0
    %v241 = vmax.f32 %v237, 0.0
    %v242 = vld [vmem:[%s5] sm:$0xff]
    %v243 = vld [vmem:[%s5 + $0x8] sm:$0xff]
    %v244 = vld [vmem:[%s5 + $0x10] sm:$0xff]
    %v245 = vld [vmem:[%s5 + $0x18] sm:$0xff]
    %v246 = vld [vmem:[%s5 + $0x20] sm:$0xff]
    %v247 = vld [vmem:[%s5 + $0x28] sm:$0xff]
    %v248 = vld [vmem:[%s5 + $0x30] sm:$0xff]
    %v249 = vld [vmem:[%s5 + $0x38] sm:$0xff]
    %v250 = vld [vmem:[%s6] sm:$0x1]
    %v252 = vlaneseq
    %v253 = vshrl.u32 %v252, 7
    %v254 = vsub.s32 0, %v253
    %v255 = vrot.slane %v250, %v254
    %v258 = vsel %vm158, %v240, 0
    %v261 = vsel %vm158, %v241, 0
    %263 = vmatprep.subr.mxu0 0.0
    %264 = vmatpush1.msra.mxu0 %v242
    %265 = vmatprep.subr.mxu0 0.0
    %266 = vmatpush1.msra.mxu0 %v243
    %267 = vmatprep.subr.mxu0 0.0
    %268 = vmatpush1.msra.mxu0 %v244
    %269 = vmatprep.subr.mxu0 0.0
    %270 = vmatpush1.msra.mxu0 %v245
    %271 = vmatprep.subr.mxu0 0.0
    %272 = vmatpush1.msra.mxu0 %v246
    %273 = vmatprep.subr.mxu0 0.0
    %274 = vmatpush1.msra.mxu0 %v247
    %275 = vmatprep.subr.mxu0 0.0
    %276 = vmatpush1.msra.mxu0 %v248
    %277 = vmatprep.subr.mxu0 0.0
    %278 = vmatpush1.msra.mxu0 %v249
    %279 = vmatprep.subr.mxu0 0.0
    %280 = vmatpush1.msra.mxu0 0.0
    %281 = vmatprep.subr.mxu0 0.0
    %282 = vmatpush1.msra.mxu0 0.0
    %283 = vmatprep.subr.mxu0 0.0
    %284 = vmatpush1.msra.mxu0 0.0
    %285 = vmatprep.subr.mxu0 0.0
    %286 = vmatpush1.msra.mxu0 0.0
    %287 = vmatprep.subr.mxu0 0.0
    %288 = vmatpush1.msra.mxu0 0.0
    %289 = vmatprep.subr.mxu0 0.0
    %290 = vmatpush1.msra.mxu0 0.0
    %291 = vmatprep.subr.mxu0 0.0
    %292 = vmatpush1.msra.mxu0 0.0
    %293 = vmatprep.subr.mxu0 0.0
    %294 = vmatpush1.msra.mxu0 0.0
    %295 = vmatprep.subr.mxu0 0.0
    %296 = vmatpush1.msra.mxu0 0.0
    %297 = vmatprep.subr.mxu0 0.0
    %298 = vmatpush1.msra.mxu0 0.0
    %299 = vmatprep.subr.mxu0 0.0
    %300 = vmatpush1.msra.mxu0 0.0
    %301 = vmatprep.subr.mxu0 0.0
    %302 = vmatpush1.msra.mxu0 0.0
    %303 = vmatprep.subr.mxu0 0.0
    %304 = vmatpush1.msra.mxu0 0.0
    %305 = vmatprep.subr.mxu0 0.0
    %306 = vmatpush1.msra.mxu0 0.0
    %307 = vmatprep.subr.mxu0 0.0
    %308 = vmatpush1.msra.mxu0 0.0
    %309 = vmatprep.subr.mxu0 0.0
    %310 = vmatpush1.msra.mxu0 0.0
    %311 = vmatprep.subr.mxu0 0.0
    %312 = vmatpush1.msra.mxu0 0.0
    %313 = vmatprep.subr.mxu0 0.0
    %314 = vmatpush1.msra.mxu0 0.0
    %315 = vmatprep.subr.mxu0 0.0
    %316 = vmatpush1.msra.mxu0 0.0
    %317 = vmatprep.subr.mxu0 0.0
    %318 = vmatpush1.msra.mxu0 0.0
    %319 = vmatprep.subr.mxu0 0.0
    %320 = vmatpush1.msra.mxu0 0.0
    %321 = vmatprep.subr.mxu0 0.0
    %322 = vmatpush1.msra.mxu0 0.0
    %323 = vmatprep.subr.mxu0 0.0
    %324 = vmatpush1.msra.mxu0 0.0
    %325 = vmatprep.subr.mxu0 0.0
    %326 = vmatpush1.msra.mxu0 0.0
    %327 = vmatprep.mubr.f32.mxu0 0.0
    %328 = vmatmul.mubr.f32.gmra.mrb[0].mxu0 %v258
    %v329 = vpop.f32.mrb[0].mxu0
    %v330 = vadd.f32 %v255, %v329
    %v331 = vpop.f32.mrb[0].mxu0
    %332 = vmatprep.mubr.f32.mxu0 0.0
    %333 = vmatmul.mubr.f32.gmra.mrb[0].mxu0 %v261
    %v334 = vpop.f32.mrb[0].mxu0
    %v335 = vadd.f32 %v255, %v334
    %v336 = vpop.f32.mrb[0].mxu0
    %337 = vdwg.mxu0
    %v338 = vmax.f32 %v330, 0.0
    %v339 = vmax.f32 %v335, 0.0
    %v340 = vld [vmem:[%s7] sm:$0xff]
    %v341 = vld [vmem:[%s7 + $0x8] sm:$0xff]
    %v342 = vld [vmem:[%s8] sm:$0x1]
    %v344 = vlaneseq
    %v345 = vshrl.u32 %v344, 7
    %v346 = vsub.s32 0, %v345
    %v347 = vrot.slane %v342, %v346
    %vm349 = vcmask 130048
    %v351 = vsel %vm349, %v338, 0
    %v354 = vsel %vm349, %v339, 0
    %356 = vmatprep.subr.mxu0 0.0
    %357 = vmatpush1.msra.mxu0 %v340
    %358 = vmatprep.subr.mxu0 0.0
    %359 = vmatpush1.msra.mxu0 %v341
    %360 = vmatprep.subr.mxu0 0.0
    %361 = vmatpush1.msra.mxu0 0.0
    %362 = vmatprep.subr.mxu0 0.0
    %363 = vmatpush1.msra.mxu0 0.0
    %364 = vmatprep.subr.mxu0 0.0
    %365 = vmatpush1.msra.mxu0 0.0
    %366 = vmatprep.subr.mxu0 0.0
    %367 = vmatpush1.msra.mxu0 0.0
    %368 = vmatprep.subr.mxu0 0.0
    %369 = vmatpush1.msra.mxu0 0.0
    %370 = vmatprep.subr.mxu0 0.0
    %371 = vmatpush1.msra.mxu0 0.0
    %372 = vmatprep.subr.mxu0 0.0
    %373 = vmatpush1.msra.mxu0 0.0
    %374 = vmatprep.subr.mxu0 0.0
    %375 = vmatpush1.msra.mxu0 0.0
    %376 = vmatprep.subr.mxu0 0.0
    %377 = vmatpush1.msra.mxu0 0.0
    %378 = vmatprep.subr.mxu0 0.0
    %379 = vmatpush1.msra.mxu0 0.0
    %380 = vmatprep.subr.mxu0 0.0
    %381 = vmatpush1.msra.mxu0 0.0
    %382 = vmatprep.subr.mxu0 0.0
    %383 = vmatpush1.msra.mxu0 0.0
    %384 = vmatprep.subr.mxu0 0.0
    %385 = vmatpush1.msra.mxu0 0.0
    %386 = vmatprep.subr.mxu0 0.0
    %387 = vmatpush1.msra.mxu0 0.0
    %388 = vmatprep.subr.mxu0 0.0
    %389 = vmatpush1.msra.mxu0 0.0
    %390 = vmatprep.subr.mxu0 0.0
    %391 = vmatpush1.msra.mxu0 0.0
    %392 = vmatprep.subr.mxu0 0.0
    %393 = vmatpush1.msra.mxu0 0.0
    %394 = vmatprep.subr.mxu0 0.0
    %395 = vmatpush1.msra.mxu0 0.0
    %396 = vmatprep.subr.mxu0 0.0
    %397 = vmatpush1.msra.mxu0 0.0
    %398 = vmatprep.subr.mxu0 0.0
    %399 = vmatpush1.msra.mxu0 0.0
    %400 = vmatprep.subr.mxu0 0.0
    %401 = vmatpush1.msra.mxu0 0.0
    %402 = vmatprep.subr.mxu0 0.0
    %403 = vmatpush1.msra.mxu0 0.0
    %404 = vmatprep.subr.mxu0 0.0
    %405 = vmatpush1.msra.mxu0 0.0
    %406 = vmatprep.subr.mxu0 0.0
    %407 = vmatpush1.msra.mxu0 0.0
    %408 = vmatprep.subr.mxu0 0.0
    %409 = vmatpush1.msra.mxu0 0.0
    %410 = vmatprep.subr.mxu0 0.0
    %411 = vmatpush1.msra.mxu0 0.0
    %412 = vmatprep.subr.mxu0 0.0
    %413 = vmatpush1.msra.mxu0 0.0
    %414 = vmatprep.subr.mxu0 0.0
    %415 = vmatpush1.msra.mxu0 0.0
    %416 = vmatprep.subr.mxu0 0.0
    %417 = vmatpush1.msra.mxu0 0.0
    %418 = vmatprep.subr.mxu0 0.0
    %419 = vmatpush1.msra.mxu0 0.0
    %420 = vmatprep.mubr.f32.mxu0 0.0
    %421 = vmatmul.mubr.f32.gmra.mrb[0].mxu0 %v351
    %v422 = vpop.f32.mrb[0].mxu0
    %v423 = vadd.f32 %v347, %v422
    %v424 = vpop.f32.mrb[0].mxu0
    %425 = vmatprep.mubr.f32.mxu0 0.0
    %426 = vmatmul.mubr.f32.gmra.mrb[0].mxu0 %v354
    %v427 = vpop.f32.mrb[0].mxu0
    %v428 = vadd.f32 %v347, %v427
    %v429 = vpop.f32.mrb[0].mxu0
    %430 = vdwg.mxu0
    %vm431 = vcmask 31744
    %432 = vst.msk [vmem:[%s9] sm:$0xff] %vm431, %v423
    %433 = vst.msk [vmem:[%s9 + $0x8] sm:$0xff] %vm431, %v428
    // Predicated region
    $region42: #{tpu_custom_call.1} parent=1 // pred_check
      _
    $region43: #{tpu_custom_call.1} parent=1 // pred_check_branch
      %435 = sbr.rel (0) target = $region45
    $region44: #{tpu_custom_call.1} parent=1 // pred_region
      _
    $region45: #{tpu_custom_call.1} parent=1 // pred_fallthru
      _
    // Predicated region
    $region46: #{tpu_custom_call.1} parent=1 // pred_check
      _
    $region47: #{tpu_custom_call.1} parent=1 // pred_check_branch
      %437 = sbr.rel (0) target = $region49
    $region48: #{tpu_custom_call.1} parent=1 // pred_region
      _
    $region49: #{tpu_custom_call.1} parent=1 // pred_fallthru
      _
    %438 = vsyncpa [#allocation3], 1

</llo_original>
